<compile_context>
chip_gen: v7x
topology: tpu7x:2x2x1
jax: 0.10.0
libtpu: 0.0.40
codegen_flags: <defaults>
</compile_context>

<pallas_src>
import functools
import math

import jax
import jax.numpy as jnp
from jax import lax
from jax.experimental import pallas as pl
from jax.experimental.pallas import tpu as pltpu


# ---------------------------------------------------------------------------
# Rotation-matrix construction (exact port of the PyTorch _get_rotation_matrix)
# ---------------------------------------------------------------------------
def _get_rotation_matrix(thetas):
    """thetas: (bs, g) -> rotation matrices (bs, g, 9, 9), identical semantics to torch."""
    bs, g = thetas.shape
    t = thetas.reshape(-1)
    x = jnp.cos(t)
    y = jnp.sin(t)
    a = x - y
    b = x * y
    c = x + y
    z = jnp.zeros_like(t)
    one = jnp.ones_like(t)

    def rows(rs):
        return jnp.stack([jnp.stack(r, axis=-1) for r in rs], axis=-2)  # (n, 9, 9)

    pos = rows([
        [a, 1 - a, z, z, z, z, z, z, z],
        [z, x - b, b, z, 1 - c + b, y - b, z, z, z],
        [z, z, a, z, z, 1 - a, z, z, z],
        [b, y - b, z, x - b, 1 - c + b, z, z, z, z],
        [z, z, z, z, one, z, z, z, z],
        [z, z, z, z, 1 - c + b, x - b, z, y - b, b],
        [z, z, z, 1 - a, z, z, a, z, z],
        [z, z, z, y - b, 1 - c + b, z, b, x - b, z],
        [z, z, z, z, z, z, z, 1 - a, a],
    ])
    neg = rows([
        [c, z, z, 1 - c, z, z, z, z, z],
        [-b, x + b, z, b - y, 1 - a - b, z, z, z, z],
        [z, 1 - c, c, z, z, z, z, z, z],
        [z, z, z, x + b, 1 - a - b, z, -b, b - y, z],
        [z, z, z, z, one, z, z, z, z],
        [z, b - y, -b, z, 1 - a - b, x + b, z, z, z],
        [z, z, z, z, z, z, c, 1 - c, z],
        [z, z, z, z, 1 - a - b, b - y, z, x + b, -b],
        [z, z, z, z, z, 1 - c, z, z, c],
    ])
    mask = (t >= 0).astype(t.dtype)[:, None, None]
    rot = mask * pos + (1.0 - mask) * neg  # (n, 9, 9)
    return rot.reshape(bs, g, 9, 9)


# ---------------------------------------------------------------------------
# Pallas kernel: 9 accumulated per-tap MXU matmuls, lane-dense (Cout, H*W) store
# ---------------------------------------------------------------------------
def _arc_kernel(x_ref, w_ref, o_ref, *, width):
    # x_ref : VMEM f32 [1, Cin, H*W + 2W + 2]  flat, zero-padded activation row
    # w_ref : VMEM f32 [1, 9, Cout, Cin]       per-sample rotated per-tap weights
    # o_ref : VMEM f32 [1, Cout, H*W]          NCHW-flat output (lane-dense on H*W)
    _, cout, hw = o_ref.shape
    W = width

    # Lane masks that zero the wrapped left/right-padding contributions.
    col = lax.broadcasted_iota(jnp.int32, (1, hw), 1) % W
    not_left = col != 0            # used for taps with kw == 0
    not_right = col != (W - 1)     # used for taps with kw == 2

    acc = jnp.zeros((cout, hw), jnp.float32)
    for kh in range(3):
        for kw in range(3):
            tap = kh * 3 + kw
            # Contiguous lane slice of the flat padded row: no reshape, no concat.
            x_tap = x_ref[0, :, pl.ds(kh * W + kw, hw)]          # (Cin, HW)
            if kw == 0:
                x_tap = jnp.where(not_left, x_tap, 0.0)
            elif kw == 2:
                x_tap = jnp.where(not_right, x_tap, 0.0)
            acc = acc + jnp.dot(w_ref[0, tap], x_tap,
                                preferred_element_type=jnp.float32)
    o_ref[0] = acc


# ---------------------------------------------------------------------------
# Module wrapper
# ---------------------------------------------------------------------------
class AdaptiveRotatedConv2dPallas:
    """JAX/Pallas equivalent of AdaptiveRotatedConv2d_multichannel_fast_twoside
    (defaults: kernel_number=1, num_groups_1=1, num_groups_2=1, groups=1)."""

    def __init__(self, in_channels, out_channels, kernel_size=3, stride=1, padding=1,
                 dilation=1, groups=1, kernel_number=1, num_groups_1=1, num_groups_2=1,
                 key=None):
        assert kernel_size == 3 and stride == 1 and padding == 1 and dilation == 1
        assert groups == 1 and kernel_number == 1
        assert num_groups_1 == 1 and num_groups_2 == 1  # defaults of the reference module
        if key is None:
            key = jax.random.PRNGKey(0)
        self.in_channels = in_channels
        self.out_channels = out_channels
        self.g = num_groups_1 * num_groups_2

        k1, k2, k3 = jax.random.split(key, 3)
        # kaiming_normal_(mode='fan_out') style init for weight (1, Cout, Cin, 3, 3)
        fan_out = out_channels * kernel_size * kernel_size
        std = math.sqrt(2.0 / fan_out)
        self.weight = std * jax.random.normal(
            k1, (1, out_channels, in_channels, 3, 3), jnp.float32)

        # TODO(synk): rounting_func is an external, undefined module in the reference;
        # a deterministic GAP + linear head (sigmoid -> lambdas, pi*tanh -> angles) stands in.
        self.route_w = 0.1 * jax.random.normal(k2, (in_channels, 2 * self.g), jnp.float32)
        self.route_b = 0.1 * jax.random.normal(k3, (2 * self.g,), jnp.float32)

    def routing(self, x_nchw):
        pooled = jnp.mean(x_nchw, axis=(2, 3))            # (B, Cin)
        feat = pooled @ self.route_w + self.route_b       # (B, 2g)
        alphas = jax.nn.sigmoid(feat[:, : self.g])        # (B, g)
        angles = jnp.pi * jnp.tanh(feat[:, self.g:])      # (B, g) in (-pi, pi)
        return alphas, angles

    def __call__(self, x_nchw):
        bs, cin, H, W = x_nchw.shape
        cout = self.out_channels
        HW = H * W
        L = HW + 2 * W + 2   # flat padded row length: covers tap offsets 0..2W+2

        # --- parameter prep (tiny, plain JAX): lambda * R(theta) applied to the 9 taps.
        alphas, angles = self.routing(x_nchw)
        R = _get_rotation_matrix(angles)[:, 0] * alphas[:, :, None]   # (B, 9, 9)
        W9 = self.weight[0].reshape(cout, cin, 9)                     # (Cout, Cin, 9)
        w_rot = jnp.einsum('btj,oij->btoi', R, W9)                    # (B, 9, Cout, Cin)

        # --- activation prep: NCHW stays NCHW. Free flatten + ONE zero-pad of
        # (W+1) elements on each side of the flat spatial axis. No transpose.
        # TODO(synk): fold this pad into the kernel (halo DMA) to drop the extra HBM pass.
        x_flat = x_nchw.reshape(bs, cin, HW).astype(jnp.float32)
        x_pad = jnp.pad(x_flat, ((0, 0), (0, 0), (W + 1, W + 1)))     # (B, Cin, L)

        # VMEM limit derived from actual per-step tile bytes (double-buffered).
        x_blk = cin * L * 4
        w_blk = 9 * cout * cin * 4
        o_blk = cout * HW * 4
        vmem_need = 2 * (x_blk + w_blk + o_blk) + o_blk
        vmem_limit = int(min(max(vmem_need + (4 << 20), 32 << 20), 96 << 20))

        flops = 2 * bs * HW * 9 * cin * cout
        bytes_accessed = bs * (x_blk + w_blk + o_blk)

        kernel = functools.partial(_arc_kernel, width=W)
        out_flat = pl.pallas_call(
            kernel,
            out_shape=jax.ShapeDtypeStruct((bs, cout, HW), jnp.float32),
            grid=(bs,),
            in_specs=[
                pl.BlockSpec((1, cin, L), lambda b: (b, 0, 0)),
                pl.BlockSpec((1, 9, cout, cin), lambda b: (b, 0, 0, 0)),
            ],
            out_specs=pl.BlockSpec((1, cout, HW), lambda b: (b, 0, 0)),
            compiler_params=pltpu.CompilerParams(
                dimension_semantics=("parallel",),
                vmem_limit_bytes=vmem_limit),
            cost_estimate=pl.CostEstimate(
                flops=flops, transcendentals=0, bytes_accessed=bytes_accessed),
        )(x_pad, w_rot)

        # NCHW-flat -> NCHW: free reshape, no trim / transpose / extra HBM pass.
        return out_flat.reshape(bs, cout, H, W)


# ---------------------------------------------------------------------------
# Pure-JAX reference (same math, standard conv primitive) for validation
# ---------------------------------------------------------------------------
def _reference(model, x_nchw):
    bs, cin, H, W = x_nchw.shape
    cout = model.out_channels
    alphas, angles = model.routing(x_nchw)
    R = _get_rotation_matrix(angles)[:, 0] * alphas[:, :, None]     # (B, 9, 9)
    W9 = model.weight[0].reshape(cout, cin, 9)
    Wrot = jnp.einsum('bij,ocj->boci', R, W9).reshape(bs, cout, cin, 3, 3)

    def conv_one(xb, wb):
        return lax.conv_general_dilated(
            xb[None], wb, window_strides=(1, 1), padding=((1, 1), (1, 1)),
            dimension_numbers=('NCHW', 'OIHW', 'NCHW'),
            precision=lax.Precision.HIGHEST)[0]

    return jax.vmap(conv_one)(x_nchw.astype(jnp.float32), Wrot)


if __name__ == "__main__":
    key = jax.random.PRNGKey(0)
    kx, kp = jax.random.split(key)

    bs, cin, cout, H, W = 2, 4, 8, 16, 16
    x = jax.random.normal(kx, (bs, cin, H, W), jnp.float32)

    model = AdaptiveRotatedConv2dPallas(cin, cout, key=kp)
    out = jax.block_until_ready(model(x))
    assert out.shape == (bs, cout, H, W), out.shape

    ref = _reference(model, x)
    max_err = float(jnp.max(jnp.abs(out - ref)))
    assert jnp.allclose(out, ref, atol=1e-2, rtol=1e-2), f"max abs err {max_err}"

    print("KERNEL_OK")
</pallas_src>

<mosaic_0001>
module attributes {stable_mosaic.version = 11 : i64} {
  func.func @_arc_kernel(%arg0: i32, %arg1: memref<1x4x290xf32, #tpu.memory_space<vmem>>, %arg2: memref<1x9x8x4xf32, #tpu.memory_space<vmem>>, %arg3: memref<1x8x256xf32, #tpu.memory_space<vmem>>) attributes {dimension_semantics = [#tpu.dimension_semantics<parallel>], iteration_bounds = array<i64: 2>, scalar_prefetch = 0 : i64, scratch_operands = 0 : i64, tpu.core_type = #tpu.core_type<tc>, window_params = [{transform_indices = @transform_0, window_bounds = array<i64: 1, 4, 290>}, {transform_indices = @transform_1, window_bounds = array<i64: 1, 9, 8, 4>}, {transform_indices = @transform_2, window_bounds = array<i64: 1, 8, 256>}]} {
    %0 = tpu.iota {dimensions = array<i32: 1>} : vector<1x256xi32>
    %c16_i32 = arith.constant 16 : i32
    %c0_i32 = arith.constant 0 : i32
    %1 = arith.cmpi eq, %c16_i32, %c0_i32 : i32
    %c1_i32 = arith.constant 1 : i32
    %2 = arith.select %1, %c1_i32, %c16_i32 : i32
    %3 = vector.broadcast %2 : i32 to vector<1x256xi32>
    %4 = arith.remsi %0, %3 : vector<1x256xi32>
    %c0_i32_0 = arith.constant 0 : i32
    %5 = vector.broadcast %c0_i32_0 : i32 to vector<1x256xi32>
    %6 = arith.cmpi ne, %4, %5 : vector<1x256xi32>
    %c0_i32_1 = arith.constant 0 : i32
    %7 = vector.broadcast %c0_i32_1 : i32 to vector<1x256xi32>
    %8 = arith.cmpi slt, %4, %7 : vector<1x256xi32>
    %c0_i32_2 = arith.constant 0 : i32
    %9 = arith.cmpi slt, %2, %c0_i32_2 : i32
    %10 = vector.broadcast %9 : i1 to vector<1x256xi1>
    %11 = vector.broadcast %10 : vector<1x256xi1> to vector<1x256xi1>
    %12 = arith.xori %8, %11 : vector<1x256xi1>
    %13 = arith.andi %12, %6 : vector<1x256xi1>
    %14 = vector.broadcast %2 : i32 to vector<1x256xi32>
    %15 = arith.addi %4, %14 : vector<1x256xi32>
    %16 = arith.select %13, %15, %4 : vector<1x256xi1>, vector<1x256xi32>
    %c0_i32_3 = arith.constant 0 : i32
    %17 = vector.broadcast %c0_i32_3 : i32 to vector<1x256xi32>
    %18 = arith.cmpi ne, %16, %17 : vector<1x256xi32>
    %c15_i32 = arith.constant 15 : i32
    %19 = vector.broadcast %c15_i32 : i32 to vector<1x256xi32>
    %20 = arith.cmpi ne, %16, %19 : vector<1x256xi32>
    %cst = arith.constant 0.000000e+00 : f32
    %21 = vector.broadcast %cst : f32 to vector<8x256xf32>
    %c0 = arith.constant 0 : index
    %c0_4 = arith.constant 0 : index
    %c0_5 = arith.constant 0 : index
    %22 = vector.load %arg1[%c0, %c0_4, %c0_5] : memref<1x4x290xf32, #tpu.memory_space<vmem>>, vector<1x4x256xf32>
    %23 = vector.shape_cast %22 : vector<1x4x256xf32> to vector<4x256xf32>
    %cst_6 = arith.constant 0.000000e+00 : f32
    %24 = vector.shape_cast %18 : vector<1x256xi1> to vector<1x256xi1>
    %25 = vector.broadcast %24 : vector<1x256xi1> to vector<4x256xi1>
    %26 = vector.broadcast %cst_6 : f32 to vector<4x256xf32>
    %27 = arith.select %25, %23, %26 : vector<4x256xi1>, vector<4x256xf32>
    %c0_7 = arith.constant 0 : index
    %c0_8 = arith.constant 0 : index
    %c0_9 = arith.constant 0 : index
    %c0_10 = arith.constant 0 : index
    %28 = vector.load %arg2[%c0_7, %c0_8, %c0_9, %c0_10] : memref<1x9x8x4xf32, #tpu.memory_space<vmem>>, vector<1x1x8x4xf32>
    %29 = vector.shape_cast %28 : vector<1x1x8x4xf32> to vector<8x4xf32>
    %cst_11 = arith.constant dense<0.000000e+00> : vector<8x256xf32>
    %30 = tpu.matmul %29, %27, %cst_11 {dimension_numbers = #tpu.dot_dimension_numbers<[1], [0], [0], [1], [0, 0, 1, 1], [], []>} : vector<8x4xf32>, vector<4x256xf32>, vector<8x256xf32> -> vector<8x256xf32>
    %31 = arith.addf %21, %30 : vector<8x256xf32>
    %c0_12 = arith.constant 0 : index
    %c0_13 = arith.constant 0 : index
    %c1 = arith.constant 1 : index
    %32 = vector.load %arg1[%c0_12, %c0_13, %c1] : memref<1x4x290xf32, #tpu.memory_space<vmem>>, vector<1x4x256xf32>
    %33 = vector.shape_cast %32 : vector<1x4x256xf32> to vector<4x256xf32>
    %c0_14 = arith.constant 0 : index
    %c1_15 = arith.constant 1 : index
    %c0_16 = arith.constant 0 : index
    %c0_17 = arith.constant 0 : index
    %34 = vector.load %arg2[%c0_14, %c1_15, %c0_16, %c0_17] : memref<1x9x8x4xf32, #tpu.memory_space<vmem>>, vector<1x1x8x4xf32>
    %35 = vector.shape_cast %34 : vector<1x1x8x4xf32> to vector<8x4xf32>
    %cst_18 = arith.constant dense<0.000000e+00> : vector<8x256xf32>
    %36 = tpu.matmul %35, %33, %cst_18 {dimension_numbers = #tpu.dot_dimension_numbers<[1], [0], [0], [1], [0, 0, 1, 1], [], []>} : vector<8x4xf32>, vector<4x256xf32>, vector<8x256xf32> -> vector<8x256xf32>
    %37 = arith.addf %31, %36 : vector<8x256xf32>
    %c0_19 = arith.constant 0 : index
    %c0_20 = arith.constant 0 : index
    %c2 = arith.constant 2 : index
    %38 = vector.load %arg1[%c0_19, %c0_20, %c2] : memref<1x4x290xf32, #tpu.memory_space<vmem>>, vector<1x4x256xf32>
    %39 = vector.shape_cast %38 : vector<1x4x256xf32> to vector<4x256xf32>
    %cst_21 = arith.constant 0.000000e+00 : f32
    %40 = vector.shape_cast %20 : vector<1x256xi1> to vector<1x256xi1>
    %41 = vector.broadcast %40 : vector<1x256xi1> to vector<4x256xi1>
    %42 = vector.broadcast %cst_21 : f32 to vector<4x256xf32>
    %43 = arith.select %41, %39, %42 : vector<4x256xi1>, vector<4x256xf32>
    %c0_22 = arith.constant 0 : index
    %c2_23 = arith.constant 2 : index
    %c0_24 = arith.constant 0 : index
    %c0_25 = arith.constant 0 : index
    %44 = vector.load %arg2[%c0_22, %c2_23, %c0_24, %c0_25] : memref<1x9x8x4xf32, #tpu.memory_space<vmem>>, vector<1x1x8x4xf32>
    %45 = vector.shape_cast %44 : vector<1x1x8x4xf32> to vector<8x4xf32>
    %cst_26 = arith.constant dense<0.000000e+00> : vector<8x256xf32>
    %46 = tpu.matmul %45, %43, %cst_26 {dimension_numbers = #tpu.dot_dimension_numbers<[1], [0], [0], [1], [0, 0, 1, 1], [], []>} : vector<8x4xf32>, vector<4x256xf32>, vector<8x256xf32> -> vector<8x256xf32>
    %47 = arith.addf %37, %46 : vector<8x256xf32>
    %c0_27 = arith.constant 0 : index
    %c0_28 = arith.constant 0 : index
    %c16 = arith.constant 16 : index
    %48 = vector.load %arg1[%c0_27, %c0_28, %c16] : memref<1x4x290xf32, #tpu.memory_space<vmem>>, vector<1x4x256xf32>
    %49 = vector.shape_cast %48 : vector<1x4x256xf32> to vector<4x256xf32>
    %cst_29 = arith.constant 0.000000e+00 : f32
    %50 = vector.shape_cast %18 : vector<1x256xi1> to vector<1x256xi1>
    %51 = vector.broadcast %50 : vector<1x256xi1> to vector<4x256xi1>
    %52 = vector.broadcast %cst_29 : f32 to vector<4x256xf32>
    %53 = arith.select %51, %49, %52 : vector<4x256xi1>, vector<4x256xf32>
    %c0_30 = arith.constant 0 : index
    %c3 = arith.constant 3 : index
    %c0_31 = arith.constant 0 : index
    %c0_32 = arith.constant 0 : index
    %54 = vector.load %arg2[%c0_30, %c3, %c0_31, %c0_32] : memref<1x9x8x4xf32, #tpu.memory_space<vmem>>, vector<1x1x8x4xf32>
    %55 = vector.shape_cast %54 : vector<1x1x8x4xf32> to vector<8x4xf32>
    %cst_33 = arith.constant dense<0.000000e+00> : vector<8x256xf32>
    %56 = tpu.matmul %55, %53, %cst_33 {dimension_numbers = #tpu.dot_dimension_numbers<[1], [0], [0], [1], [0, 0, 1, 1], [], []>} : vector<8x4xf32>, vector<4x256xf32>, vector<8x256xf32> -> vector<8x256xf32>
    %57 = arith.addf %47, %56 : vector<8x256xf32>
    %c0_34 = arith.constant 0 : index
    %c0_35 = arith.constant 0 : index
    %c17 = arith.constant 17 : index
    %58 = vector.load %arg1[%c0_34, %c0_35, %c17] : memref<1x4x290xf32, #tpu.memory_space<vmem>>, vector<1x4x256xf32>
    %59 = vector.shape_cast %58 : vector<1x4x256xf32> to vector<4x256xf32>
    %c0_36 = arith.constant 0 : index
    %c4 = arith.constant 4 : index
    %c0_37 = arith.constant 0 : index
    %c0_38 = arith.constant 0 : index
    %60 = vector.load %arg2[%c0_36, %c4, %c0_37, %c0_38] : memref<1x9x8x4xf32, #tpu.memory_space<vmem>>, vector<1x1x8x4xf32>
    %61 = vector.shape_cast %60 : vector<1x1x8x4xf32> to vector<8x4xf32>
    %cst_39 = arith.constant dense<0.000000e+00> : vector<8x256xf32>
    %62 = tpu.matmul %61, %59, %cst_39 {dimension_numbers = #tpu.dot_dimension_numbers<[1], [0], [0], [1], [0, 0, 1, 1], [], []>} : vector<8x4xf32>, vector<4x256xf32>, vector<8x256xf32> -> vector<8x256xf32>
    %63 = arith.addf %57, %62 : vector<8x256xf32>
    %c0_40 = arith.constant 0 : index
    %c0_41 = arith.constant 0 : index
    %c18 = arith.constant 18 : index
    %64 = vector.load %arg1[%c0_40, %c0_41, %c18] : memref<1x4x290xf32, #tpu.memory_space<vmem>>, vector<1x4x256xf32>
    %65 = vector.shape_cast %64 : vector<1x4x256xf32> to vector<4x256xf32>
    %cst_42 = arith.constant 0.000000e+00 : f32
    %66 = vector.shape_cast %20 : vector<1x256xi1> to vector<1x256xi1>
    %67 = vector.broadcast %66 : vector<1x256xi1> to vector<4x256xi1>
    %68 = vector.broadcast %cst_42 : f32 to vector<4x256xf32>
    %69 = arith.select %67, %65, %68 : vector<4x256xi1>, vector<4x256xf32>
    %c0_43 = arith.constant 0 : index
    %c5 = arith.constant 5 : index
    %c0_44 = arith.constant 0 : index
    %c0_45 = arith.constant 0 : index
    %70 = vector.load %arg2[%c0_43, %c5, %c0_44, %c0_45] : memref<1x9x8x4xf32, #tpu.memory_space<vmem>>, vector<1x1x8x4xf32>
    %71 = vector.shape_cast %70 : vector<1x1x8x4xf32> to vector<8x4xf32>
    %cst_46 = arith.constant dense<0.000000e+00> : vector<8x256xf32>
    %72 = tpu.matmul %71, %69, %cst_46 {dimension_numbers = #tpu.dot_dimension_numbers<[1], [0], [0], [1], [0, 0, 1, 1], [], []>} : vector<8x4xf32>, vector<4x256xf32>, vector<8x256xf32> -> vector<8x256xf32>
    %73 = arith.addf %63, %72 : vector<8x256xf32>
    %c0_47 = arith.constant 0 : index
    %c0_48 = arith.constant 0 : index
    %c32 = arith.constant 32 : index
    %74 = vector.load %arg1[%c0_47, %c0_48, %c32] : memref<1x4x290xf32, #tpu.memory_space<vmem>>, vector<1x4x256xf32>
    %75 = vector.shape_cast %74 : vector<1x4x256xf32> to vector<4x256xf32>
    %cst_49 = arith.constant 0.000000e+00 : f32
    %76 = vector.shape_cast %18 : vector<1x256xi1> to vector<1x256xi1>
    %77 = vector.broadcast %76 : vector<1x256xi1> to vector<4x256xi1>
    %78 = vector.broadcast %cst_49 : f32 to vector<4x256xf32>
    %79 = arith.select %77, %75, %78 : vector<4x256xi1>, vector<4x256xf32>
    %c0_50 = arith.constant 0 : index
    %c6 = arith.constant 6 : index
    %c0_51 = arith.constant 0 : index
    %c0_52 = arith.constant 0 : index
    %80 = vector.load %arg2[%c0_50, %c6, %c0_51, %c0_52] : memref<1x9x8x4xf32, #tpu.memory_space<vmem>>, vector<1x1x8x4xf32>
    %81 = vector.shape_cast %80 : vector<1x1x8x4xf32> to vector<8x4xf32>
    %cst_53 = arith.constant dense<0.000000e+00> : vector<8x256xf32>
    %82 = tpu.matmul %81, %79, %cst_53 {dimension_numbers = #tpu.dot_dimension_numbers<[1], [0], [0], [1], [0, 0, 1, 1], [], []>} : vector<8x4xf32>, vector<4x256xf32>, vector<8x256xf32> -> vector<8x256xf32>
    %83 = arith.addf %73, %82 : vector<8x256xf32>
    %c0_54 = arith.constant 0 : index
    %c0_55 = arith.constant 0 : index
    %c33 = arith.constant 33 : index
    %84 = vector.load %arg1[%c0_54, %c0_55, %c33] : memref<1x4x290xf32, #tpu.memory_space<vmem>>, vector<1x4x256xf32>
    %85 = vector.shape_cast %84 : vector<1x4x256xf32> to vector<4x256xf32>
    %c0_56 = arith.constant 0 : index
    %c7 = arith.constant 7 : index
    %c0_57 = arith.constant 0 : index
    %c0_58 = arith.constant 0 : index
    %86 = vector.load %arg2[%c0_56, %c7, %c0_57, %c0_58] : memref<1x9x8x4xf32, #tpu.memory_space<vmem>>, vector<1x1x8x4xf32>
    %87 = vector.shape_cast %86 : vector<1x1x8x4xf32> to vector<8x4xf32>
    %cst_59 = arith.constant dense<0.000000e+00> : vector<8x256xf32>
    %88 = tpu.matmul %87, %85, %cst_59 {dimension_numbers = #tpu.dot_dimension_numbers<[1], [0], [0], [1], [0, 0, 1, 1], [], []>} : vector<8x4xf32>, vector<4x256xf32>, vector<8x256xf32> -> vector<8x256xf32>
    %89 = arith.addf %83, %88 : vector<8x256xf32>
    %c0_60 = arith.constant 0 : index
    %c0_61 = arith.constant 0 : index
    %c34 = arith.constant 34 : index
    %90 = vector.load %arg1[%c0_60, %c0_61, %c34] : memref<1x4x290xf32, #tpu.memory_space<vmem>>, vector<1x4x256xf32>
    %91 = vector.shape_cast %90 : vector<1x4x256xf32> to vector<4x256xf32>
    %cst_62 = arith.constant 0.000000e+00 : f32
    %92 = vector.shape_cast %20 : vector<1x256xi1> to vector<1x256xi1>
    %93 = vector.broadcast %92 : vector<1x256xi1> to vector<4x256xi1>
    %94 = vector.broadcast %cst_62 : f32 to vector<4x256xf32>
    %95 = arith.select %93, %91, %94 : vector<4x256xi1>, vector<4x256xf32>
    %c0_63 = arith.constant 0 : index
    %c8 = arith.constant 8 : index
    %c0_64 = arith.constant 0 : index
    %c0_65 = arith.constant 0 : index
    %96 = vector.load %arg2[%c0_63, %c8, %c0_64, %c0_65] : memref<1x9x8x4xf32, #tpu.memory_space<vmem>>, vector<1x1x8x4xf32>
    %97 = vector.shape_cast %96 : vector<1x1x8x4xf32> to vector<8x4xf32>
    %cst_66 = arith.constant dense<0.000000e+00> : vector<8x256xf32>
    %98 = tpu.matmul %97, %95, %cst_66 {dimension_numbers = #tpu.dot_dimension_numbers<[1], [0], [0], [1], [0, 0, 1, 1], [], []>} : vector<8x4xf32>, vector<4x256xf32>, vector<8x256xf32> -> vector<8x256xf32>
    %99 = arith.addf %89, %98 : vector<8x256xf32>
    %c0_67 = arith.constant 0 : index
    %c0_68 = arith.constant 0 : index
    %c0_69 = arith.constant 0 : index
    %100 = vector.load %arg3[%c0_67, %c0_68, %c0_69] : memref<1x8x256xf32, #tpu.memory_space<vmem>>, vector<1x8x256xf32>
    %101 = vector.shape_cast %100 : vector<1x8x256xf32> to vector<8x256xf32>
    %102 = vector.shape_cast %99 : vector<8x256xf32> to vector<1x8x256xf32>
    tpu.vector_store %arg3[%c0_67, %c0_68, %c0_69], %102 {strides = array<i32>} : memref<1x8x256xf32, #tpu.memory_space<vmem>>, vector<1x8x256xf32>,
    return
  }
  func.func @transform_0(%arg0: i32) -> (i32, i32, i32) {
    %c0_i32 = arith.constant 0 : i32
    %c0_i32_0 = arith.constant 0 : i32
    %c0_i32_1 = arith.constant 0 : i32
    return %arg0, %c0_i32, %c0_i32_0 : i32, i32, i32
  }
  func.func @transform_1(%arg0: i32) -> (i32, i32, i32, i32) {
    %c0_i32 = arith.constant 0 : i32
    %c0_i32_0 = arith.constant 0 : i32
    %c0_i32_1 = arith.constant 0 : i32
    %c0_i32_2 = arith.constant 0 : i32
    return %arg0, %c0_i32, %c0_i32_0, %c0_i32_1 : i32, i32, i32, i32
  }
  func.func @transform_2(%arg0: i32) -> (i32, i32, i32) {
    %c0_i32 = arith.constant 0 : i32
    %c0_i32_0 = arith.constant 0 : i32
    %c0_i32_1 = arith.constant 0 : i32
    return %arg0, %c0_i32, %c0_i32_0 : i32, i32, i32
  }
}

</mosaic_0001>

<llo_original>
// kernel: tpu_custom_call.1
$region0: #{tpu_custom_call.1}
  #allocation0 [shape = 'u32[]', space=smem, size = 0x4, offset = 0x4, fixed_abs, tag = 'smem constant byte address 0x4 - core index']
  #allocation1 [shape = 'u32[144,128]{1,0:T(1,128)}', space=vmem, size = 0x12000, scoped, tag = 'internal scratch']
  %s0 = inlined_call_operand.vmem [shape: f32[2,4,290], index: 0, kind: input, shape index: {}]
  %s1 = inlined_call_operand.vmem [shape: f32[2,9,8,4], index: 1, kind: input, shape index: {}]
  %s2 = inlined_call_operand.hbm [shape: f32[2,8,256], index: 2, kind: output, shape index: {}]
  %s3 = sld [smem:[#allocation0]]
  $region41: #{tpu_custom_call.1} parent=0
    _
  %s5 = ssub.s32 1, %s3
  %s6 = scalar_select 0, %s5, %s3
  $region1: #{tpu_custom_call.1} parent=0
    #allocation2 [shape = 'u8[16384]{0}', space=vmem, size = 0x4000, scoped, tag = 'output window, operand 0']
    #allocation3 [shape = 's32[2]{0}', space=sflag, size = 0x8, scoped, tag = 'scoped memory for tpu_custom_call.1']
    %7 = vsyncpa [#allocation3], 0
    %s8 = scalar_lea.sflag [#allocation3], 1
    %9 = vsyncpa %s8, 0
    loop: start=0, step=1, limit=4
    $region2: #{tpu_custom_call.1} parent=1 // loop_pre_header
      _
    $region3: #{tpu_custom_call.1} parent=1 // loop_header
      %s11 = sphi 0, %s15
      %p12 = scmp.ge.s32.totalorder %s11, 4
      %s21 = sphi 0, %s23
      %s24 = sphi 0, %s21
      %s25 = sphi 0, %s24
      %s41 = sphi 0, %s25
      %s47 = sphi 0, %s49
      %s50 = sphi 0, %s47
      %s51 = sphi 0, %s50
      %s67 = sphi 0, %s51
      %s73 = sphi 0, %s75
      %s76 = sphi 0, %s73
      %s77 = sphi 0, %s76
      %s93 = sphi 0, %s77
    $region4: #{tpu_custom_call.1} parent=1 // loop_header_branch
      %14 = sbr.rel (%p12) target = $region8
    $region5: #{tpu_custom_call.1} parent=1 // loop_body
      %s16 = ssub.s32 %s11, 1
      %s17 = ssub.s32 %s11, 2
      %s18 = sadd.s32 %s11, 1
      %s19 = ssub.s32 %s11, %s18
      %p20 = scmp.eq.s32.totalorder %s19, 0
      %s22 = sadd.s32 %s21, 1
      %s23 = scalar_select %p20, %s21, %s22
      %p26 = pneg %p20
      %p27 = scmp.eq.s32.totalorder %s11, 1
      %p28 = por %p26, %p27
      %p29 = scmp.ne.s32.totalorder %s21, %s24
      %p30 = scmp.eq.s32.totalorder %s11, 0
      %p31 = por %p29, %p30
      %p32 = scmp.ne.s32.totalorder %s21, %s24
      %p33 = scmp.eq.s32.totalorder %s16, 1
      %p34 = por %p32, %p33
      %p35 = scmp.ne.s32.totalorder %s24, %s25
      %p36 = scmp.eq.s32.totalorder %s16, 0
      %p37 = por %p35, %p36
      %p38 = scmp.ne.s32.totalorder %s24, %s25
      %p39 = scmp.eq.s32.totalorder %s17, 1
      %p40 = por %p38, %p39
      %p42 = scmp.ne.s32.totalorder %s25, %s41
      %p43 = scmp.eq.s32.totalorder %s17, 0
      %p44 = por %p42, %p43
      %s45 = ssub.s32 %s11, %s18
      %p46 = scmp.eq.s32.totalorder %s45, 0
      %s48 = sadd.s32 %s47, 1
      %s49 = scalar_select %p46, %s47, %s48
      %p52 = pneg %p46
      %p53 = scmp.eq.s32.totalorder %s11, 1
      %p54 = por %p52, %p53
      %p55 = scmp.ne.s32.totalorder %s47, %s50
      %p56 = scmp.eq.s32.totalorder %s11, 0
      %p57 = por %p55, %p56
      %p58 = scmp.ne.s32.totalorder %s47, %s50
      %p59 = scmp.eq.s32.totalorder %s16, 1
      %p60 = por %p58, %p59
      %p61 = scmp.ne.s32.totalorder %s50, %s51
      %p62 = scmp.eq.s32.totalorder %s16, 0
      %p63 = por %p61, %p62
      %p64 = scmp.ne.s32.totalorder %s50, %s51
      %p65 = scmp.eq.s32.totalorder %s17, 1
      %p66 = por %p64, %p65
      %p68 = scmp.ne.s32.totalorder %s51, %s67
      %p69 = scmp.eq.s32.totalorder %s17, 0
      %p70 = por %p68, %p69
      %s71 = ssub.s32 %s11, %s18
      %p72 = scmp.eq.s32.totalorder %s71, 0
      %s74 = sadd.s32 %s73, 1
      %s75 = scalar_select %p72, %s73, %s74
      %p78 = pneg %p72
      %p79 = scmp.eq.s32.totalorder %s11, 1
      %p80 = por %p78, %p79
      %p81 = scmp.ne.s32.totalorder %s73, %s76
      %p82 = scmp.eq.s32.totalorder %s11, 0
      %p83 = por %p81, %p82
      %p84 = scmp.ne.s32.totalorder %s73, %s76
      %p85 = scmp.eq.s32.totalorder %s16, 1
      %p86 = por %p84, %p85
      %p87 = scmp.ne.s32.totalorder %s76, %s77
      %p88 = scmp.eq.s32.totalorder %s16, 0
      %p89 = por %p87, %p88
      %p90 = scmp.ne.s32.totalorder %s76, %s77
      %p91 = scmp.eq.s32.totalorder %s17, 1
      %p92 = por %p90, %p91
      %p94 = scmp.ne.s32.totalorder %s77, %s93
      %p95 = scmp.eq.s32.totalorder %s17, 0
      %p96 = por %p94, %p95
      %p97 = scmp.le.s32.totalorder 1, %s11
      %p98 = scmp.lt.s32.totalorder %s11, 3
      %p99 = pnand %p97, %p98
      %p100 = pneg %p99
      // Predicated region
      $region9: #{tpu_custom_call.1} parent=5 // pred_check
        _
      $region10: #{tpu_custom_call.1} parent=5 // pred_check_branch
        %102 = sbr.rel (%p99) target = $region12
      $region11: #{tpu_custom_call.1} parent=5 // pred_region
        %s103 = ssub.s32 %s11, 1
      $region12: #{tpu_custom_call.1} parent=5 // pred_fallthru
        _
      %p104 = scmp.lt.s32.totalorder %s11, 2
      // Predicated region
      $region13: #{tpu_custom_call.1} parent=5 // pred_check
        %p105 = pneg %p104
      $region14: #{tpu_custom_call.1} parent=5 // pred_check_branch
        %107 = sbr.rel (%p105) target = $region16
      $region15: #{tpu_custom_call.1} parent=5 // pred_region
        // Predicated region
        $region17: #{tpu_custom_call.1} parent=15 // pred_check
          %p108 = pneg %p31
        $region18: #{tpu_custom_call.1} parent=15 // pred_check_branch
          %110 = sbr.rel (%p108) target = $region20
        $region19: #{tpu_custom_call.1} parent=15 // pred_region
          %p111 = scmp.lt.s32.totalorder %s11, 1
          %s112 = scalar_select %p111, %s11, 1
          %s113 = smul.addr %s112, 3
          %s114 = smul.addr %s113, 4
          %s115 = scalar_lea.vmem %s0, %s114
        $region20: #{tpu_custom_call.1} parent=15 // pred_fallthru
          _
        // Predicated region
        $region21: #{tpu_custom_call.1} parent=15 // pred_check
          %p116 = pneg %p57
        $region22: #{tpu_custom_call.1} parent=15 // pred_check_branch
          %118 = sbr.rel (%p116) target = $region24
        $region23: #{tpu_custom_call.1} parent=15 // pred_region
          %p119 = scmp.lt.s32.totalorder %s11, 1
          %s120 = scalar_select %p119, %s11, 1
          %s121 = smul.addr %s120, 9
          %s122 = smul.addr %s121, 8
          %s123 = scalar_lea.vmem %s1, %s122
        $region24: #{tpu_custom_call.1} parent=15 // pred_fallthru
          _
      $region16: #{tpu_custom_call.1} parent=5 // pred_fallthru
        _
      %p124 = scmp.le.s32.totalorder 1, %s11
      %p125 = scmp.lt.s32.totalorder %s11, 3
      %p126 = pnand %p124, %p125
      %p127 = pneg %p126
      // Predicated region
      $region25: #{tpu_custom_call.1} parent=5 // pred_check
        _
      $region26: #{tpu_custom_call.1} parent=5 // pred_check_branch
        %129 = sbr.rel (%p126) target = $region28
      $region27: #{tpu_custom_call.1} parent=5 // pred_region
        %s130 = ssub.s32 %s11, 1
        %p131 = scmp.lt.s32.totalorder %s16, 1
        %s132 = scalar_select %p131, %s16, 1
        %s133 = smul.addr %s132, 3
        %s134 = smul.addr %s133, 4
        %s135 = scalar_lea.vmem %s0, %s134
        %p136 = pneg %p37
        %p137 = pneg %p34
        %p138 = scmp.lt.s32.totalorder %s16, 1
        %s139 = scalar_select %p138, %s16, 1
        %s140 = smul.addr %s139, 9
        %s141 = smul.addr %s140, 8
        %s142 = scalar_lea.vmem %s1, %s141
        %p143 = pneg %p63
        %p144 = pneg %p60
        %p145 = pneg %p89
        %p146 = pneg %p86
        %s147 = sand.u32 %s76, 1
        %s148 = scalar_lea.sflag [#allocation3], %s147
        %s149 = sand.u32 %s76, 1
        %s150 = smul.addr %s149, 16
        %s151 = scalar_lea.vmem [#allocation2], %s150
        %p152 = scmp.lt.s32.totalorder %s16, 1
        %s153 = scalar_select %p152, %s16, 1
        %s154 = smul.addr %s153, 3
        %s155 = smul.addr %s154, 4
        %s156 = scalar_lea.vmem %s0, %s155
        %p157 = scmp.lt.s32.totalorder %s16, 1
        %s158 = scalar_select %p157, %s16, 1
        %s159 = smul.addr %s158, 9
        %s160 = smul.addr %s159, 8
        %s161 = scalar_lea.vmem %s1, %s160
        %v162 = vlaneseq
        %v163 = vand.u32 %v162, 127
        %v164 = vadd.s32 %v163, 128
        %vm165 = vcmp.lt.s32.totalorder %v163, 0
        %v166 = vsub.s32 0, %v163
        %v167 = vsel %vm165, %v166, %v163
        %v168 = vshrl.u32 %v167, 4
        %v169 = vand.u32 %v167, 15
        %v170 = vsub.s32 0, %v169
        %v171 = vsel %vm165, %v170, %v169
        %vm172 = vcmp.lt.s32.totalorder %v164, 0
        %v173 = vsub.s32 0, %v164
        %v174 = vsel %vm172, %v173, %v164
        %v175 = vshrl.u32 %v174, 4
        %v176 = vand.u32 %v174, 15
        %v177 = vsub.s32 0, %v176
        %v178 = vsel %vm172, %v177, %v176
        %vm179 = vcmp.ne.s32.totalorder %v171, 0
        %vm180 = vcmp.ne.s32.totalorder %v178, 0
        %vm181 = vcmp.lt.s32.totalorder %v171, 0
        %vm182 = vcmp.lt.s32.totalorder %v178, 0
        %vm183 = vmand %vm181, %vm179
        %vm184 = vmand %vm182, %vm180
        %v185 = vadd.s32 %v171, 16
        %v186 = vadd.s32 %v178, 16
        %v187 = vsel %vm183, %v185, %v171
        %v188 = vsel %vm184, %v186, %v178
        %vm189 = vcmp.ne.s32.totalorder %v187, 0
        %vm190 = vcmp.ne.s32.totalorder %v188, 0
        %vm191 = vcmp.ne.s32.totalorder %v187, 15
        %vm192 = vcmp.ne.s32.totalorder %v188, 15
        %v193 = vld [vmem:[%s156] sm:$0xff]
        %v194 = vsel %vm189, 1, 0
        %v195 = vsel %vm190, 1, 0
        %vm196 = vcmp.eq.s32.totalorder %v194, 1
        %vm197 = vcmp.eq.s32.totalorder %v195, 1
        %v199 = vcombine.high %v193, %v193
        %v201 = vsel %vm196, %v193, 0.0
        %v202 = vsel %vm197, %v199, 0.0
        %v203 = vld [vmem:[%s161] sm:$0xff]
        %v204 = vld [vmem:[%s156 + $0x8] sm:$0xf]
        %s205 = scalar_lea.vmem %s161, 8
        %v206 = vld [vmem:[%s205] sm:$0xff]
        %208 = vrot.lane.b32.xlu0 %v193, 127
        %v209 = vpop.permute.xlu0 %208
        %210 = vrot.lane.b32.xlu0 %v199, 127
        %v211 = vpop.permute.xlu0 %210
        %212 = vrot.lane.b32.xlu0 %v204, 127
        %v213 = vpop.permute.xlu0 %212
        %vm214 = vcmask 1039360
        %v215 = vsel %vm214, %v209, %v211
        %v216 = vsel %vm214, %v211, %v213
        %vm217 = vcmask 31744
        %v219 = vsel %vm217, %v206, 0
        %vm221 = vcmask 1043456
        %v222 = vsel %vm221, %v215, 0
        %v224 = vsel %vm221, %v216, 0
        %226 = vmatprep.subr.mxu0 %v224
        %227 = vmatpush1.msra.mxu0 %v222
        %228 = vmatprep.subr.mxu0 0.0
        %229 = vmatpush1.msra.mxu0 0.0
        %230 = vmatprep.subr.mxu0 0.0
        %231 = vmatpush1.msra.mxu0 0.0
        %232 = vmatprep.subr.mxu0 0.0
        %233 = vmatpush1.msra.mxu0 0.0
        %234 = vmatprep.subr.mxu0 0.0
        %235 = vmatpush1.msra.mxu0 0.0
        %236 = vmatprep.subr.mxu0 0.0
        %237 = vmatpush1.msra.mxu0 0.0
        %238 = vmatprep.subr.mxu0 0.0
        %239 = vmatpush1.msra.mxu0 0.0
        %240 = vmatprep.subr.mxu0 0.0
        %241 = vmatpush1.msra.mxu0 0.0
        %242 = vmatprep.subr.mxu0 0.0
        %243 = vmatpush1.msra.mxu0 0.0
        %244 = vmatprep.subr.mxu0 0.0
        %245 = vmatpush1.msra.mxu0 0.0
        %246 = vmatprep.subr.mxu0 0.0
        %247 = vmatpush1.msra.mxu0 0.0
        %248 = vmatprep.subr.mxu0 0.0
        %249 = vmatpush1.msra.mxu0 0.0
        %250 = vmatprep.subr.mxu0 0.0
        %251 = vmatpush1.msra.mxu0 0.0
        %252 = vmatprep.subr.mxu0 0.0
        %253 = vmatpush1.msra.mxu0 0.0
        %254 = vmatprep.subr.mxu0 0.0
        %255 = vmatpush1.msra.mxu0 0.0
        %256 = vmatprep.subr.mxu0 0.0
        %257 = vmatpush1.msra.mxu0 0.0
        %258 = vmatprep.subr.mxu0 0.0
        %259 = vmatpush1.msra.mxu0 0.0
        %260 = vmatprep.subr.mxu0 0.0
        %261 = vmatpush1.msra.mxu0 0.0
        %262 = vmatprep.subr.mxu0 0.0
        %263 = vmatpush1.msra.mxu0 0.0
        %264 = vmatprep.subr.mxu0 0.0
        %265 = vmatpush1.msra.mxu0 0.0
        %266 = vmatprep.subr.mxu0 0.0
        %267 = vmatpush1.msra.mxu0 0.0
        %268 = vmatprep.subr.mxu0 0.0
        %269 = vmatpush1.msra.mxu0 0.0
        %270 = vmatprep.subr.mxu0 0.0
        %271 = vmatpush1.msra.mxu0 0.0
        %272 = vmatprep.subr.mxu0 0.0
        %273 = vmatpush1.msra.mxu0 0.0
        %274 = vmatprep.subr.mxu0 0.0
        %275 = vmatpush1.msra.mxu0 0.0
        %276 = vmatprep.subr.mxu0 0.0
        %277 = vmatpush1.msra.mxu0 0.0
        %278 = vmatprep.subr.mxu0 0.0
        %279 = vmatpush1.msra.mxu0 0.0
        %280 = vmatprep.subr.mxu0 0.0
        %281 = vmatpush1.msra.mxu0 0.0
        %282 = vmatprep.subr.mxu0 0.0
        %283 = vmatpush1.msra.mxu0 0.0
        %284 = vmatprep.subr.mxu0 0.0
        %285 = vmatpush1.msra.mxu0 0.0
        %286 = vmatprep.subr.mxu0 0.0
        %287 = vmatpush1.msra.mxu0 0.0
        %288 = vmatprep.subr.mxu0 0.0
        %289 = vmatpush1.msra.mxu0 0.0
        %290 = vmatprep.mubr.f32.mxu0 0.0
        %291 = vmatmul.mubr.f32.gmra.mrb[0].mxu0 %v219
        %v292 = vpop.f32.mrb[0].mxu0
        %v293 = vadd.f32 0.0, %v292
        %v294 = vpop.f32.mrb[0].mxu0
        %v295 = vadd.f32 0.0, %v294
        %296 = vdwg.mxu0
        %v298 = vsel %vm217, %v203, 0
        %v301 = vsel %vm221, %v201, 0
        %v304 = vsel %vm221, %v202, 0
        %306 = vmatprep.subr.mxu0 %v304
        %307 = vmatpush1.msra.mxu0 %v301
        %308 = vmatprep.subr.mxu0 0.0
        %309 = vmatpush1.msra.mxu0 0.0
        %310 = vmatprep.subr.mxu0 0.0
        %311 = vmatpush1.msra.mxu0 0.0
        %312 = vmatprep.subr.mxu0 0.0
        %313 = vmatpush1.msra.mxu0 0.0
        %314 = vmatprep.subr.mxu0 0.0
        %315 = vmatpush1.msra.mxu0 0.0
        %316 = vmatprep.subr.mxu0 0.0
        %317 = vmatpush1.msra.mxu0 0.0
        %318 = vmatprep.subr.mxu0 0.0
        %319 = vmatpush1.msra.mxu0 0.0
        %320 = vmatprep.subr.mxu0 0.0
        %321 = vmatpush1.msra.mxu0 0.0
        %322 = vmatprep.subr.mxu0 0.0
        %323 = vmatpush1.msra.mxu0 0.0
        %324 = vmatprep.subr.mxu0 0.0
        %325 = vmatpush1.msra.mxu0 0.0
        %326 = vmatprep.subr.mxu0 0.0
        %327 = vmatpush1.msra.mxu0 0.0
        %328 = vmatprep.subr.mxu0 0.0
        %329 = vmatpush1.msra.mxu0 0.0
        %330 = vmatprep.subr.mxu0 0.0
        %331 = vmatpush1.msra.mxu0 0.0
        %332 = vmatprep.subr.mxu0 0.0
        %333 = vmatpush1.msra.mxu0 0.0
        %334 = vmatprep.subr.mxu0 0.0
        %335 = vmatpush1.msra.mxu0 0.0
        %336 = vmatprep.subr.mxu0 0.0
        %337 = vmatpush1.msra.mxu0 0.0
        %338 = vmatprep.subr.mxu0 0.0
        %339 = vmatpush1.msra.mxu0 0.0
        %340 = vmatprep.subr.mxu0 0.0
        %341 = vmatpush1.msra.mxu0 0.0
        %342 = vmatprep.subr.mxu0 0.0
        %343 = vmatpush1.msra.mxu0 0.0
        %344 = vmatprep.subr.mxu0 0.0
        %345 = vmatpush1.msra.mxu0 0.0
        %346 = vmatprep.subr.mxu0 0.0
        %347 = vmatpush1.msra.mxu0 0.0
        %348 = vmatprep.subr.mxu0 0.0
        %349 = vmatpush1.msra.mxu0 0.0
        %350 = vmatprep.subr.mxu0 0.0
        %351 = vmatpush1.msra.mxu0 0.0
        %352 = vmatprep.subr.mxu0 0.0
        %353 = vmatpush1.msra.mxu0 0.0
        %354 = vmatprep.subr.mxu0 0.0
        %355 = vmatpush1.msra.mxu0 0.0
        %356 = vmatprep.subr.mxu0 0.0
        %357 = vmatpush1.msra.mxu0 0.0
        %358 = vmatprep.subr.mxu0 0.0
        %359 = vmatpush1.msra.mxu0 0.0
        %360 = vmatprep.subr.mxu0 0.0
        %361 = vmatpush1.msra.mxu0 0.0
        %362 = vmatprep.subr.mxu0 0.0
        %363 = vmatpush1.msra.mxu0 0.0
        %364 = vmatprep.subr.mxu0 0.0
        %365 = vmatpush1.msra.mxu0 0.0
        %366 = vmatprep.subr.mxu0 0.0
        %367 = vmatpush1.msra.mxu0 0.0
        %368 = vmatprep.subr.mxu0 0.0
        %369 = vmatpush1.msra.mxu0 0.0
        %370 = vmatprep.mubr.f32.mxu0 0.0
        %371 = vmatmul.mubr.f32.gmra.mrb[0].mxu0 %v298
        %v372 = vpop.f32.mrb[0].mxu0
        %v373 = vadd.f32 %v293, %v372
        %v374 = vpop.f32.mrb[0].mxu0
        %v375 = vadd.f32 %v295, %v374
        %376 = vdwg.mxu0
        %v377 = vld [vmem:[%s156] sm:$0xff]
        %v378 = vld [vmem:[%s156 + $0x8] sm:$0xf]
        %v379 = vsel %vm191, 1, 0
        %v380 = vsel %vm192, 1, 0
        %vm381 = vcmp.eq.s32.totalorder %v379, 1
        %vm382 = vcmp.eq.s32.totalorder %v380, 1
        %v385 = vcombine.high %v377, %v377
        %386 = vrot.lane.b32.xlu0 %v377, 126
        %v387 = vpop.permute.xlu0 %386
        %388 = vrot.lane.b32.xlu0 %v385, 126
        %v389 = vpop.permute.xlu0 %388
        %390 = vrot.lane.b32.xlu0 %v378, 126
        %v391 = vpop.permute.xlu0 %390
        %vm392 = vcmask 1031168
        %v393 = vsel %vm392, %v387, %v389
        %v394 = vsel %vm392, %v389, %v391
        %v397 = vsel %vm381, %v393, 0.0
        %v398 = vsel %vm382, %v394, 0.0
        %s399 = scalar_lea.vmem %s161, 16
        %v400 = vld [vmem:[%s399] sm:$0xff]
        %v402 = vsel %vm217, %v400, 0
        %v405 = vsel %vm221, %v397, 0
        %v408 = vsel %vm221, %v398, 0
        %410 = vmatprep.subr.mxu0 %v408
        %411 = vmatpush1.msra.mxu0 %v405
        %412 = vmatprep.subr.mxu0 0.0
        %413 = vmatpush1.msra.mxu0 0.0
        %414 = vmatprep.subr.mxu0 0.0
        %415 = vmatpush1.msra.mxu0 0.0
        %416 = vmatprep.subr.mxu0 0.0
        %417 = vmatpush1.msra.mxu0 0.0
        %418 = vmatprep.subr.mxu0 0.0
        %419 = vmatpush1.msra.mxu0 0.0
        %420 = vmatprep.subr.mxu0 0.0
        %421 = vmatpush1.msra.mxu0 0.0
        %422 = vmatprep.subr.mxu0 0.0
        %423 = vmatpush1.msra.mxu0 0.0
        %424 = vmatprep.subr.mxu0 0.0
        %425 = vmatpush1.msra.mxu0 0.0
        %426 = vmatprep.subr.mxu0 0.0
        %427 = vmatpush1.msra.mxu0 0.0
        %428 = vmatprep.subr.mxu0 0.0
        %429 = vmatpush1.msra.mxu0 0.0
        %430 = vmatprep.subr.mxu0 0.0
        %431 = vmatpush1.msra.mxu0 0.0
        %432 = vmatprep.subr.mxu0 0.0
        %433 = vmatpush1.msra.mxu0 0.0
        %434 = vmatprep.subr.mxu0 0.0
        %435 = vmatpush1.msra.mxu0 0.0
        %436 = vmatprep.subr.mxu0 0.0
        %437 = vmatpush1.msra.mxu0 0.0
        %438 = vmatprep.subr.mxu0 0.0
        %439 = vmatpush1.msra.mxu0 0.0
        %440 = vmatprep.subr.mxu0 0.0
        %441 = vmatpush1.msra.mxu0 0.0
        %442 = vmatprep.subr.mxu0 0.0
        %443 = vmatpush1.msra.mxu0 0.0
        %444 = vmatprep.subr.mxu0 0.0
        %445 = vmatpush1.msra.mxu0 0.0
        %446 = vmatprep.subr.mxu0 0.0
        %447 = vmatpush1.msra.mxu0 0.0
        %448 = vmatprep.subr.mxu0 0.0
        %449 = vmatpush1.msra.mxu0 0.0
        %450 = vmatprep.subr.mxu0 0.0
        %451 = vmatpush1.msra.mxu0 0.0
        %452 = vmatprep.subr.mxu0 0.0
        %453 = vmatpush1.msra.mxu0 0.0
        %454 = vmatprep.subr.mxu0 0.0
        %455 = vmatpush1.msra.mxu0 0.0
        %456 = vmatprep.subr.mxu0 0.0
        %457 = vmatpush1.msra.mxu0 0.0
        %458 = vmatprep.subr.mxu0 0.0
        %459 = vmatpush1.msra.mxu0 0.0
        %460 = vmatprep.subr.mxu0 0.0
        %461 = vmatpush1.msra.mxu0 0.0
        %462 = vmatprep.subr.mxu0 0.0
        %463 = vmatpush1.msra.mxu0 0.0
        %464 = vmatprep.subr.mxu0 0.0
        %465 = vmatpush1.msra.mxu0 0.0
        %466 = vmatprep.subr.mxu0 0.0
        %467 = vmatpush1.msra.mxu0 0.0
        %468 = vmatprep.subr.mxu0 0.0
        %469 = vmatpush1.msra.mxu0 0.0
        %470 = vmatprep.subr.mxu0 0.0
        %471 = vmatpush1.msra.mxu0 0.0
        %472 = vmatprep.subr.mxu0 0.0
        %473 = vmatpush1.msra.mxu0 0.0
        %474 = vmatprep.mubr.f32.mxu0 0.0
        %475 = vmatmul.mubr.f32.gmra.mrb[0].mxu0 %v402
        %v476 = vpop.f32.mrb[0].mxu0
        %v477 = vadd.f32 0.0, %v476
        %v478 = vpop.f32.mrb[0].mxu0
        %v479 = vadd.f32 0.0, %v478
        %480 = vdwg.mxu0
        %v481 = vadd.f32 %v373, %v477
        %v482 = vadd.f32 %v375, %v479
        %v483 = vld [vmem:[%s156] sm:$0xff]
        %v484 = vld [vmem:[%s156 + $0x8] sm:$0xf]
        %v487 = vcombine.high %v483, %v483
        %488 = vrot.lane.b32.xlu0 %v483, 112
        %v489 = vpop.permute.xlu0 %488
        %490 = vrot.lane.b32.xlu0 %v487, 112
        %v491 = vpop.permute.xlu0 %490
        %492 = vrot.lane.b32.xlu0 %v484, 112
        %v493 = vpop.permute.xlu0 %492
        %vm494 = vcmask 916480
        %v495 = vsel %vm494, %v489, %v491
        %v496 = vsel %vm494, %v491, %v493
        %v499 = vsel %vm196, %v495, 0.0
        %v500 = vsel %vm197, %v496, 0.0
        %s501 = scalar_lea.vmem %s161, 24
        %v502 = vld [vmem:[%s501] sm:$0xff]
        %v504 = vsel %vm217, %v502, 0
        %v507 = vsel %vm221, %v499, 0
        %v510 = vsel %vm221, %v500, 0
        %512 = vmatprep.subr.mxu0 %v510
        %513 = vmatpush1.msra.mxu0 %v507
        %514 = vmatprep.subr.mxu0 0.0
        %515 = vmatpush1.msra.mxu0 0.0
        %516 = vmatprep.subr.mxu0 0.0
        %517 = vmatpush1.msra.mxu0 0.0
        %518 = vmatprep.subr.mxu0 0.0
        %519 = vmatpush1.msra.mxu0 0.0
        %520 = vmatprep.subr.mxu0 0.0
        %521 = vmatpush1.msra.mxu0 0.0
        %522 = vmatprep.subr.mxu0 0.0
        %523 = vmatpush1.msra.mxu0 0.0
        %524 = vmatprep.subr.mxu0 0.0
        %525 = vmatpush1.msra.mxu0 0.0
        %526 = vmatprep.subr.mxu0 0.0
        %527 = vmatpush1.msra.mxu0 0.0
        %528 = vmatprep.subr.mxu0 0.0
        %529 = vmatpush1.msra.mxu0 0.0
        %530 = vmatprep.subr.mxu0 0.0
        %531 = vmatpush1.msra.mxu0 0.0
        %532 = vmatprep.subr.mxu0 0.0
        %533 = vmatpush1.msra.mxu0 0.0
        %534 = vmatprep.subr.mxu0 0.0
        %535 = vmatpush1.msra.mxu0 0.0
        %536 = vmatprep.subr.mxu0 0.0
        %537 = vmatpush1.msra.mxu0 0.0
        %538 = vmatprep.subr.mxu0 0.0
        %539 = vmatpush1.msra.mxu0 0.0
        %540 = vmatprep.subr.mxu0 0.0
        %541 = vmatpush1.msra.mxu0 0.0
        %542 = vmatprep.subr.mxu0 0.0
        %543 = vmatpush1.msra.mxu0 0.0
        %544 = vmatprep.subr.mxu0 0.0
        %545 = vmatpush1.msra.mxu0 0.0
        %546 = vmatprep.subr.mxu0 0.0
        %547 = vmatpush1.msra.mxu0 0.0
        %548 = vmatprep.subr.mxu0 0.0
        %549 = vmatpush1.msra.mxu0 0.0
        %550 = vmatprep.subr.mxu0 0.0
        %551 = vmatpush1.msra.mxu0 0.0
        %552 = vmatprep.subr.mxu0 0.0
        %553 = vmatpush1.msra.mxu0 0.0
        %554 = vmatprep.subr.mxu0 0.0
        %555 = vmatpush1.msra.mxu0 0.0
        %556 = vmatprep.subr.mxu0 0.0
        %557 = vmatpush1.msra.mxu0 0.0
        %558 = vmatprep.subr.mxu0 0.0
        %559 = vmatpush1.msra.mxu0 0.0
        %560 = vmatprep.subr.mxu0 0.0
        %561 = vmatpush1.msra.mxu0 0.0
        %562 = vmatprep.subr.mxu0 0.0
        %563 = vmatpush1.msra.mxu0 0.0
        %564 = vmatprep.subr.mxu0 0.0
        %565 = vmatpush1.msra.mxu0 0.0
        %566 = vmatprep.subr.mxu0 0.0
        %567 = vmatpush1.msra.mxu0 0.0
        %568 = vmatprep.subr.mxu0 0.0
        %569 = vmatpush1.msra.mxu0 0.0
        %570 = vmatprep.subr.mxu0 0.0
        %571 = vmatpush1.msra.mxu0 0.0
        %572 = vmatprep.subr.mxu0 0.0
        %573 = vmatpush1.msra.mxu0 0.0
        %574 = vmatprep.subr.mxu0 0.0
        %575 = vmatpush1.msra.mxu0 0.0
        %576 = vmatprep.mubr.f32.mxu0 0.0
        %577 = vmatmul.mubr.f32.gmra.mrb[0].mxu0 %v504
        %v578 = vpop.f32.mrb[0].mxu0
        %v579 = vadd.f32 0.0, %v578
        %v580 = vpop.f32.mrb[0].mxu0
        %v581 = vadd.f32 0.0, %v580
        %582 = vdwg.mxu0
        %v583 = vadd.f32 %v481, %v579
        %v584 = vadd.f32 %v482, %v581
        %v585 = vld [vmem:[%s156] sm:$0xff]
        %v586 = vld [vmem:[%s156 + $0x8] sm:$0xf]
        %s587 = scalar_lea.vmem %s161, 32
        %v588 = vld [vmem:[%s587] sm:$0xff]
        %v591 = vcombine.high %v585, %v585
        %592 = vrot.lane.b32.xlu0 %v585, 111
        %v593 = vpop.permute.xlu0 %592
        %594 = vrot.lane.b32.xlu0 %v591, 111
        %v595 = vpop.permute.xlu0 %594
        %596 = vrot.lane.b32.xlu0 %v586, 111
        %v597 = vpop.permute.xlu0 %596
        %vm598 = vcmask 908288
        %v599 = vsel %vm598, %v593, %v595
        %v600 = vsel %vm598, %v595, %v597
        %v602 = vsel %vm217, %v588, 0
        %v604 = vsel %vm221, %v599, 0
        %v606 = vsel %vm221, %v600, 0
        %608 = vmatprep.subr.mxu0 %v606
        %609 = vmatpush1.msra.mxu0 %v604
        %610 = vmatprep.subr.mxu0 0.0
        %611 = vmatpush1.msra.mxu0 0.0
        %612 = vmatprep.subr.mxu0 0.0
        %613 = vmatpush1.msra.mxu0 0.0
        %614 = vmatprep.subr.mxu0 0.0
        %615 = vmatpush1.msra.mxu0 0.0
        %616 = vmatprep.subr.mxu0 0.0
        %617 = vmatpush1.msra.mxu0 0.0
        %618 = vmatprep.subr.mxu0 0.0
        %619 = vmatpush1.msra.mxu0 0.0
        %620 = vmatprep.subr.mxu0 0.0
        %621 = vmatpush1.msra.mxu0 0.0
        %622 = vmatprep.subr.mxu0 0.0
        %623 = vmatpush1.msra.mxu0 0.0
        %624 = vmatprep.subr.mxu0 0.0
        %625 = vmatpush1.msra.mxu0 0.0
        %626 = vmatprep.subr.mxu0 0.0
        %627 = vmatpush1.msra.mxu0 0.0
        %628 = vmatprep.subr.mxu0 0.0
        %629 = vmatpush1.msra.mxu0 0.0
        %630 = vmatprep.subr.mxu0 0.0
        %631 = vmatpush1.msra.mxu0 0.0
        %632 = vmatprep.subr.mxu0 0.0
        %633 = vmatpush1.msra.mxu0 0.0
        %634 = vmatprep.subr.mxu0 0.0
        %635 = vmatpush1.msra.mxu0 0.0
        %636 = vmatprep.subr.mxu0 0.0
        %637 = vmatpush1.msra.mxu0 0.0
        %638 = vmatprep.subr.mxu0 0.0
        %639 = vmatpush1.msra.mxu0 0.0
        %640 = vmatprep.subr.mxu0 0.0
        %641 = vmatpush1.msra.mxu0 0.0
        %642 = vmatprep.subr.mxu0 0.0
        %643 = vmatpush1.msra.mxu0 0.0
        %644 = vmatprep.subr.mxu0 0.0
        %645 = vmatpush1.msra.mxu0 0.0
        %646 = vmatprep.subr.mxu0 0.0
        %647 = vmatpush1.msra.mxu0 0.0
        %648 = vmatprep.subr.mxu0 0.0
        %649 = vmatpush1.msra.mxu0 0.0
        %650 = vmatprep.subr.mxu0 0.0
        %651 = vmatpush1.msra.mxu0 0.0
        %652 = vmatprep.subr.mxu0 0.0
        %653 = vmatpush1.msra.mxu0 0.0
        %654 = vmatprep.subr.mxu0 0.0
        %655 = vmatpush1.msra.mxu0 0.0
        %656 = vmatprep.subr.mxu0 0.0
        %657 = vmatpush1.msra.mxu0 0.0
        %658 = vmatprep.subr.mxu0 0.0
        %659 = vmatpush1.msra.mxu0 0.0
        %660 = vmatprep.subr.mxu0 0.0
        %661 = vmatpush1.msra.mxu0 0.0
        %662 = vmatprep.subr.mxu0 0.0
        %663 = vmatpush1.msra.mxu0 0.0
        %664 = vmatprep.subr.mxu0 0.0
        %665 = vmatpush1.msra.mxu0 0.0
        %666 = vmatprep.subr.mxu0 0.0
        %667 = vmatpush1.msra.mxu0 0.0
        %668 = vmatprep.subr.mxu0 0.0
        %669 = vmatpush1.msra.mxu0 0.0
        %670 = vmatprep.subr.mxu0 0.0
        %671 = vmatpush1.msra.mxu0 0.0
        %672 = vmatprep.mubr.f32.mxu0 0.0
        %673 = vmatmul.mubr.f32.gmra.mrb[0].mxu0 %v602
        %v674 = vpop.f32.mrb[0].mxu0
        %v675 = vadd.f32 0.0, %v674
        %v676 = vpop.f32.mrb[0].mxu0
        %v677 = vadd.f32 0.0, %v676
        %678 = vdwg.mxu0
        %v679 = vadd.f32 %v583, %v675
        %v680 = vadd.f32 %v584, %v677
        %v681 = vld [vmem:[%s156] sm:$0xff]
        %v682 = vld [vmem:[%s156 + $0x8] sm:$0xf]
        %v685 = vcombine.high %v681, %v681
        %686 = vrot.lane.b32.xlu0 %v681, 110
        %v687 = vpop.permute.xlu0 %686
        %688 = vrot.lane.b32.xlu0 %v685, 110
        %v689 = vpop.permute.xlu0 %688
        %690 = vrot.lane.b32.xlu0 %v682, 110
        %v691 = vpop.permute.xlu0 %690
        %vm692 = vcmask 900096
        %v693 = vsel %vm692, %v687, %v689
        %v694 = vsel %vm692, %v689, %v691
        %v697 = vsel %vm381, %v693, 0.0
        %v698 = vsel %vm382, %v694, 0.0
        %s699 = scalar_lea.vmem %s161, 40
        %v700 = vld [vmem:[%s699] sm:$0xff]
        %v702 = vsel %vm217, %v700, 0
        %v705 = vsel %vm221, %v697, 0
        %v708 = vsel %vm221, %v698, 0
        %710 = vmatprep.subr.mxu0 %v708
        %711 = vmatpush1.msra.mxu0 %v705
        %712 = vmatprep.subr.mxu0 0.0
        %713 = vmatpush1.msra.mxu0 0.0
        %714 = vmatprep.subr.mxu0 0.0
        %715 = vmatpush1.msra.mxu0 0.0
        %716 = vmatprep.subr.mxu0 0.0
        %717 = vmatpush1.msra.mxu0 0.0
        %718 = vmatprep.subr.mxu0 0.0
        %719 = vmatpush1.msra.mxu0 0.0
        %720 = vmatprep.subr.mxu0 0.0
        %721 = vmatpush1.msra.mxu0 0.0
        %722 = vmatprep.subr.mxu0 0.0
        %723 = vmatpush1.msra.mxu0 0.0
        %724 = vmatprep.subr.mxu0 0.0
        %725 = vmatpush1.msra.mxu0 0.0
        %726 = vmatprep.subr.mxu0 0.0
        %727 = vmatpush1.msra.mxu0 0.0
        %728 = vmatprep.subr.mxu0 0.0
        %729 = vmatpush1.msra.mxu0 0.0
        %730 = vmatprep.subr.mxu0 0.0
        %731 = vmatpush1.msra.mxu0 0.0
        %732 = vmatprep.subr.mxu0 0.0
        %733 = vmatpush1.msra.mxu0 0.0
        %734 = vmatprep.subr.mxu0 0.0
        %735 = vmatpush1.msra.mxu0 0.0
        %736 = vmatprep.subr.mxu0 0.0
        %737 = vmatpush1.msra.mxu0 0.0
        %738 = vmatprep.subr.mxu0 0.0
        %739 = vmatpush1.msra.mxu0 0.0
        %740 = vmatprep.subr.mxu0 0.0
        %741 = vmatpush1.msra.mxu0 0.0
        %742 = vmatprep.subr.mxu0 0.0
        %743 = vmatpush1.msra.mxu0 0.0
        %744 = vmatprep.subr.mxu0 0.0
        %745 = vmatpush1.msra.mxu0 0.0
        %746 = vmatprep.subr.mxu0 0.0
        %747 = vmatpush1.msra.mxu0 0.0
        %748 = vmatprep.subr.mxu0 0.0
        %749 = vmatpush1.msra.mxu0 0.0
        %750 = vmatprep.subr.mxu0 0.0
        %751 = vmatpush1.msra.mxu0 0.0
        %752 = vmatprep.subr.mxu0 0.0
        %753 = vmatpush1.msra.mxu0 0.0
        %754 = vmatprep.subr.mxu0 0.0
        %755 = vmatpush1.msra.mxu0 0.0
        %756 = vmatprep.subr.mxu0 0.0
        %757 = vmatpush1.msra.mxu0 0.0
        %758 = vmatprep.subr.mxu0 0.0
        %759 = vmatpush1.msra.mxu0 0.0
        %760 = vmatprep.subr.mxu0 0.0
        %761 = vmatpush1.msra.mxu0 0.0
        %762 = vmatprep.subr.mxu0 0.0
        %763 = vmatpush1.msra.mxu0 0.0
        %764 = vmatprep.subr.mxu0 0.0
        %765 = vmatpush1.msra.mxu0 0.0
        %766 = vmatprep.subr.mxu0 0.0
        %767 = vmatpush1.msra.mxu0 0.0
        %768 = vmatprep.subr.mxu0 0.0
        %769 = vmatpush1.msra.mxu0 0.0
        %770 = vmatprep.subr.mxu0 0.0
        %771 = vmatpush1.msra.mxu0 0.0
        %772 = vmatprep.subr.mxu0 0.0
        %773 = vmatpush1.msra.mxu0 0.0
        %774 = vmatprep.mubr.f32.mxu0 0.0
        %775 = vmatmul.mubr.f32.gmra.mrb[0].mxu0 %v702
        %v776 = vpop.f32.mrb[0].mxu0
        %v777 = vadd.f32 0.0, %v776
        %v778 = vpop.f32.mrb[0].mxu0
        %v779 = vadd.f32 0.0, %v778
        %780 = vdwg.mxu0
        %v781 = vadd.f32 %v679, %v777
        %v782 = vadd.f32 %v680, %v779
        %v783 = vld [vmem:[%s156] sm:$0xff]
        %v784 = vld [vmem:[%s156 + $0x8] sm:$0xf]
        %v787 = vcombine.high %v783, %v783
        %788 = vrot.lane.b32.xlu0 %v783, 96
        %v789 = vpop.permute.xlu0 %788
        %790 = vrot.lane.b32.xlu0 %v787, 96
        %v791 = vpop.permute.xlu0 %790
        %792 = vrot.lane.b32.xlu0 %v784, 96
        %v793 = vpop.permute.xlu0 %792
        %vm794 = vcmask 785408
        %v795 = vsel %vm794, %v789, %v791
        %v796 = vsel %vm794, %v791, %v793
        %v799 = vsel %vm196, %v795, 0.0
        %v800 = vsel %vm197, %v796, 0.0
        %s801 = scalar_lea.vmem %s161, 48
        %v802 = vld [vmem:[%s801] sm:$0xff]
        %v804 = vsel %vm217, %v802, 0
        %v807 = vsel %vm221, %v799, 0
        %v810 = vsel %vm221, %v800, 0
        %812 = vmatprep.subr.mxu0 %v810
        %813 = vmatpush1.msra.mxu0 %v807
        %814 = vmatprep.subr.mxu0 0.0
        %815 = vmatpush1.msra.mxu0 0.0
        %816 = vmatprep.subr.mxu0 0.0
        %817 = vmatpush1.msra.mxu0 0.0
        %818 = vmatprep.subr.mxu0 0.0
        %819 = vmatpush1.msra.mxu0 0.0
        %820 = vmatprep.subr.mxu0 0.0
        %821 = vmatpush1.msra.mxu0 0.0
        %822 = vmatprep.subr.mxu0 0.0
        %823 = vmatpush1.msra.mxu0 0.0
        %824 = vmatprep.subr.mxu0 0.0
        %825 = vmatpush1.msra.mxu0 0.0
        %826 = vmatprep.subr.mxu0 0.0
        %827 = vmatpush1.msra.mxu0 0.0
        %828 = vmatprep.subr.mxu0 0.0
        %829 = vmatpush1.msra.mxu0 0.0
        %830 = vmatprep.subr.mxu0 0.0
        %831 = vmatpush1.msra.mxu0 0.0
        %832 = vmatprep.subr.mxu0 0.0
        %833 = vmatpush1.msra.mxu0 0.0
        %834 = vmatprep.subr.mxu0 0.0
        %835 = vmatpush1.msra.mxu0 0.0
        %836 = vmatprep.subr.mxu0 0.0
        %837 = vmatpush1.msra.mxu0 0.0
        %838 = vmatprep.subr.mxu0 0.0
        %839 = vmatpush1.msra.mxu0 0.0
        %840 = vmatprep.subr.mxu0 0.0
        %841 = vmatpush1.msra.mxu0 0.0
        %842 = vmatprep.subr.mxu0 0.0
        %843 = vmatpush1.msra.mxu0 0.0
        %844 = vmatprep.subr.mxu0 0.0
        %845 = vmatpush1.msra.mxu0 0.0
        %846 = vmatprep.subr.mxu0 0.0
        %847 = vmatpush1.msra.mxu0 0.0
        %848 = vmatprep.subr.mxu0 0.0
        %849 = vmatpush1.msra.mxu0 0.0
        %850 = vmatprep.subr.mxu0 0.0
        %851 = vmatpush1.msra.mxu0 0.0
        %852 = vmatprep.subr.mxu0 0.0
        %853 = vmatpush1.msra.mxu0 0.0
        %854 = vmatprep.subr.mxu0 0.0
        %855 = vmatpush1.msra.mxu0 0.0
        %856 = vmatprep.subr.mxu0 0.0
        %857 = vmatpush1.msra.mxu0 0.0
        %858 = vmatprep.subr.mxu0 0.0
        %859 = vmatpush1.msra.mxu0 0.0
        %860 = vmatprep.subr.mxu0 0.0
        %861 = vmatpush1.msra.mxu0 0.0
        %862 = vmatprep.subr.mxu0 0.0
        %863 = vmatpush1.msra.mxu0 0.0
        %864 = vmatprep.subr.mxu0 0.0
        %865 = vmatpush1.msra.mxu0 0.0
        %866 = vmatprep.subr.mxu0 0.0
        %867 = vmatpush1.msra.mxu0 0.0
        %868 = vmatprep.subr.mxu0 0.0
        %869 = vmatpush1.msra.mxu0 0.0
        %870 = vmatprep.subr.mxu0 0.0
        %871 = vmatpush1.msra.mxu0 0.0
        %872 = vmatprep.subr.mxu0 0.0
        %873 = vmatpush1.msra.mxu0 0.0
        %874 = vmatprep.subr.mxu0 0.0
        %875 = vmatpush1.msra.mxu0 0.0
        %876 = vmatprep.mubr.f32.mxu0 0.0
        %877 = vmatmul.mubr.f32.gmra.mrb[0].mxu0 %v804
        %v878 = vpop.f32.mrb[0].mxu0
        %v879 = vadd.f32 0.0, %v878
        %v880 = vpop.f32.mrb[0].mxu0
        %v881 = vadd.f32 0.0, %v880
        %882 = vdwg.mxu0
        %v883 = vadd.f32 %v781, %v879
        %v884 = vadd.f32 %v782, %v881
        %v885 = vld [vmem:[%s156] sm:$0xff]
        %v886 = vld [vmem:[%s156 + $0x8] sm:$0xf]
        %s887 = scalar_lea.vmem %s161, 56
        %v888 = vld [vmem:[%s887] sm:$0xff]
        %v891 = vcombine.high %v885, %v885
        %892 = vrot.lane.b32.xlu0 %v885, 95
        %v893 = vpop.permute.xlu0 %892
        %894 = vrot.lane.b32.xlu0 %v891, 95
        %v895 = vpop.permute.xlu0 %894
        %896 = vrot.lane.b32.xlu0 %v886, 95
        %v897 = vpop.permute.xlu0 %896
        %vm898 = vcmask 777216
        %v899 = vsel %vm898, %v893, %v895
        %v900 = vsel %vm898, %v895, %v897
        %v902 = vsel %vm217, %v888, 0
        %v904 = vsel %vm221, %v899, 0
        %v906 = vsel %vm221, %v900, 0
        %908 = vmatprep.subr.mxu0 %v906
        %909 = vmatpush1.msra.mxu0 %v904
        %910 = vmatprep.subr.mxu0 0.0
        %911 = vmatpush1.msra.mxu0 0.0
        %912 = vmatprep.subr.mxu0 0.0
        %913 = vmatpush1.msra.mxu0 0.0
        %914 = vmatprep.subr.mxu0 0.0
        %915 = vmatpush1.msra.mxu0 0.0
        %916 = vmatprep.subr.mxu0 0.0
        %917 = vmatpush1.msra.mxu0 0.0
        %918 = vmatprep.subr.mxu0 0.0
        %919 = vmatpush1.msra.mxu0 0.0
        %920 = vmatprep.subr.mxu0 0.0
        %921 = vmatpush1.msra.mxu0 0.0
        %922 = vmatprep.subr.mxu0 0.0
        %923 = vmatpush1.msra.mxu0 0.0
        %924 = vmatprep.subr.mxu0 0.0
        %925 = vmatpush1.msra.mxu0 0.0
        %926 = vmatprep.subr.mxu0 0.0
        %927 = vmatpush1.msra.mxu0 0.0
        %928 = vmatprep.subr.mxu0 0.0
        %929 = vmatpush1.msra.mxu0 0.0
        %930 = vmatprep.subr.mxu0 0.0
        %931 = vmatpush1.msra.mxu0 0.0
        %932 = vmatprep.subr.mxu0 0.0
        %933 = vmatpush1.msra.mxu0 0.0
        %934 = vmatprep.subr.mxu0 0.0
        %935 = vmatpush1.msra.mxu0 0.0
        %936 = vmatprep.subr.mxu0 0.0
        %937 = vmatpush1.msra.mxu0 0.0
        %938 = vmatprep.subr.mxu0 0.0
        %939 = vmatpush1.msra.mxu0 0.0
        %940 = vmatprep.subr.mxu0 0.0
        %941 = vmatpush1.msra.mxu0 0.0
        %942 = vmatprep.subr.mxu0 0.0
        %943 = vmatpush1.msra.mxu0 0.0
        %944 = vmatprep.subr.mxu0 0.0
        %945 = vmatpush1.msra.mxu0 0.0
        %946 = vmatprep.subr.mxu0 0.0
        %947 = vmatpush1.msra.mxu0 0.0
        %948 = vmatprep.subr.mxu0 0.0
        %949 = vmatpush1.msra.mxu0 0.0
        %950 = vmatprep.subr.mxu0 0.0
        %951 = vmatpush1.msra.mxu0 0.0
        %952 = vmatprep.subr.mxu0 0.0
        %953 = vmatpush1.msra.mxu0 0.0
        %954 = vmatprep.subr.mxu0 0.0
        %955 = vmatpush1.msra.mxu0 0.0
        %956 = vmatprep.subr.mxu0 0.0
        %957 = vmatpush1.msra.mxu0 0.0
        %958 = vmatprep.subr.mxu0 0.0
        %959 = vmatpush1.msra.mxu0 0.0
        %960 = vmatprep.subr.mxu0 0.0
        %961 = vmatpush1.msra.mxu0 0.0
        %962 = vmatprep.subr.mxu0 0.0
        %963 = vmatpush1.msra.mxu0 0.0
        %964 = vmatprep.subr.mxu0 0.0
        %965 = vmatpush1.msra.mxu0 0.0
        %966 = vmatprep.subr.mxu0 0.0
        %967 = vmatpush1.msra.mxu0 0.0
        %968 = vmatprep.subr.mxu0 0.0
        %969 = vmatpush1.msra.mxu0 0.0
        %970 = vmatprep.subr.mxu0 0.0
        %971 = vmatpush1.msra.mxu0 0.0
        %972 = vmatprep.mubr.f32.mxu0 0.0
        %973 = vmatmul.mubr.f32.gmra.mrb[0].mxu0 %v902
        %v974 = vpop.f32.mrb[0].mxu0
        %v975 = vadd.f32 0.0, %v974
        %v976 = vpop.f32.mrb[0].mxu0
        %v977 = vadd.f32 0.0, %v976
        %978 = vdwg.mxu0
        %v979 = vadd.f32 %v883, %v975
        %v980 = vadd.f32 %v884, %v977
        %v981 = vld [vmem:[%s156] sm:$0xff]
        %v982 = vld [vmem:[%s156 + $0x8] sm:$0xf]
        %v985 = vcombine.high %v981, %v981
        %986 = vrot.lane.b32.xlu0 %v981, 94
        %v987 = vpop.permute.xlu0 %986
        %988 = vrot.lane.b32.xlu0 %v985, 94
        %v989 = vpop.permute.xlu0 %988
        %990 = vrot.lane.b32.xlu0 %v982, 94
        %v991 = vpop.permute.xlu0 %990
        %vm992 = vcmask 769024
        %v993 = vsel %vm992, %v987, %v989
        %v994 = vsel %vm992, %v989, %v991
        %v997 = vsel %vm381, %v993, 0.0
        %v998 = vsel %vm382, %v994, 0.0
        %s999 = scalar_lea.vmem %s161, 64
        %v1000 = vld [vmem:[%s999] sm:$0xff]
        %v1002 = vsel %vm217, %v1000, 0
        %v1005 = vsel %vm221, %v997, 0
        %v1008 = vsel %vm221, %v998, 0
        %1010 = vmatprep.subr.mxu0 %v1008
        %1011 = vmatpush1.msra.mxu0 %v1005
        %1012 = vmatprep.subr.mxu0 0.0
        %1013 = vmatpush1.msra.mxu0 0.0
        %1014 = vmatprep.subr.mxu0 0.0
        %1015 = vmatpush1.msra.mxu0 0.0
        %1016 = vmatprep.subr.mxu0 0.0
        %1017 = vmatpush1.msra.mxu0 0.0
        %1018 = vmatprep.subr.mxu0 0.0
        %1019 = vmatpush1.msra.mxu0 0.0
        %1020 = vmatprep.subr.mxu0 0.0
        %1021 = vmatpush1.msra.mxu0 0.0
        %1022 = vmatprep.subr.mxu0 0.0
        %1023 = vmatpush1.msra.mxu0 0.0
        %1024 = vmatprep.subr.mxu0 0.0
        %1025 = vmatpush1.msra.mxu0 0.0
        %1026 = vmatprep.subr.mxu0 0.0
        %1027 = vmatpush1.msra.mxu0 0.0
        %1028 = vmatprep.subr.mxu0 0.0
        %1029 = vmatpush1.msra.mxu0 0.0
        %1030 = vmatprep.subr.mxu0 0.0
        %1031 = vmatpush1.msra.mxu0 0.0
        %1032 = vmatprep.subr.mxu0 0.0
        %1033 = vmatpush1.msra.mxu0 0.0
        %1034 = vmatprep.subr.mxu0 0.0
        %1035 = vmatpush1.msra.mxu0 0.0
        %1036 = vmatprep.subr.mxu0 0.0
        %1037 = vmatpush1.msra.mxu0 0.0
        %1038 = vmatprep.subr.mxu0 0.0
        %1039 = vmatpush1.msra.mxu0 0.0
        %1040 = vmatprep.subr.mxu0 0.0
        %1041 = vmatpush1.msra.mxu0 0.0
        %1042 = vmatprep.subr.mxu0 0.0
        %1043 = vmatpush1.msra.mxu0 0.0
        %1044 = vmatprep.subr.mxu0 0.0
        %1045 = vmatpush1.msra.mxu0 0.0
        %1046 = vmatprep.subr.mxu0 0.0
        %1047 = vmatpush1.msra.mxu0 0.0
        %1048 = vmatprep.subr.mxu0 0.0
        %1049 = vmatpush1.msra.mxu0 0.0
        %1050 = vmatprep.subr.mxu0 0.0
        %1051 = vmatpush1.msra.mxu0 0.0
        %1052 = vmatprep.subr.mxu0 0.0
        %1053 = vmatpush1.msra.mxu0 0.0
        %1054 = vmatprep.subr.mxu0 0.0
        %1055 = vmatpush1.msra.mxu0 0.0
        %1056 = vmatprep.subr.mxu0 0.0
        %1057 = vmatpush1.msra.mxu0 0.0
        %1058 = vmatprep.subr.mxu0 0.0
        %1059 = vmatpush1.msra.mxu0 0.0
        %1060 = vmatprep.subr.mxu0 0.0
        %1061 = vmatpush1.msra.mxu0 0.0
        %1062 = vmatprep.subr.mxu0 0.0
        %1063 = vmatpush1.msra.mxu0 0.0
        %1064 = vmatprep.subr.mxu0 0.0
        %1065 = vmatpush1.msra.mxu0 0.0
        %1066 = vmatprep.subr.mxu0 0.0
        %1067 = vmatpush1.msra.mxu0 0.0
        %1068 = vmatprep.subr.mxu0 0.0
        %1069 = vmatpush1.msra.mxu0 0.0
        %1070 = vmatprep.subr.mxu0 0.0
        %1071 = vmatpush1.msra.mxu0 0.0
        %1072 = vmatprep.subr.mxu0 0.0
        %1073 = vmatpush1.msra.mxu0 0.0
        %1074 = vmatprep.mubr.f32.mxu0 0.0
        %1075 = vmatmul.mubr.f32.gmra.mrb[0].mxu0 %v1002
        %v1076 = vpop.f32.mrb[0].mxu0
        %v1077 = vadd.f32 0.0, %v1076
        %v1078 = vpop.f32.mrb[0].mxu0
        %v1079 = vadd.f32 0.0, %v1078
        %1080 = vdwg.mxu0
        %v1081 = vadd.f32 %v979, %v1077
        %v1082 = vadd.f32 %v980, %v1079
        %1083 = vst [vmem:[%s151] sm:$0xff] %v1081
        %1084 = vst [vmem:[%s151 + $0x8] sm:$0xff] %v1082
        %s1085 = sand.u32 %s76, 1
        %s1086 = scalar_lea.sflag [#allocation3], %s1085
        %s1087 = sand.u32 %s76, 1
        %s1088 = smul.addr %s1087, 16
        %s1089 = scalar_lea.vmem [#allocation2], %s1088
        // Predicated region
        $region29: #{tpu_custom_call.1} parent=27 // pred_check
          %p1090 = pneg %p86
        $region30: #{tpu_custom_call.1} parent=27 // pred_check_branch
          %1092 = sbr.rel (%p1090) target = $region32
        $region31: #{tpu_custom_call.1} parent=27 // pred_region
          %s1094 = ssub.s32 256, 256
          %1095 = vsyncadd %s1086, %s1094
          %s1096 = smul.addr %s16, 2
          %s1097 = smul.addr %s1096, 128
          %s1098 = scalar_lea.hbm %s2, %s1097
          %s1100 = sshll.u32 %s1089, 4
          %s1101 = int_to_ptr.vmem [resolvable:$true] %s1100
          %1103 = dma.vmem_to_hbm [thread:$0]  %s1101, 256, %s1098, %s1086
        $region32: #{tpu_custom_call.1} parent=27 // pred_fallthru
          _
      $region28: #{tpu_custom_call.1} parent=5 // pred_fallthru
        _
      %p1104 = scmp.le.s32.totalorder 2, %s11
      // Predicated region
      $region33: #{tpu_custom_call.1} parent=5 // pred_check
        %p1105 = pneg %p1104
      $region34: #{tpu_custom_call.1} parent=5 // pred_check_branch
        %1107 = sbr.rel (%p1105) target = $region36
      $region35: #{tpu_custom_call.1} parent=5 // pred_region
        %s1108 = ssub.s32 %s11, 2
        // Predicated region
        $region37: #{tpu_custom_call.1} parent=35 // pred_check
          %p1109 = pneg %p92
        $region38: #{tpu_custom_call.1} parent=35 // pred_check_branch
          %1111 = sbr.rel (%p1109) target = $region40
        $region39: #{tpu_custom_call.1} parent=35 // pred_region
          %s1112 = sand.u32 %s77, 1
          %s1113 = scalar_lea.sflag [#allocation3], %s1112
          %s1114 = sand.u32 %s77, 1
          %s1115 = smul.addr %s1114, 16
          %s1116 = scalar_lea.vmem [#allocation2], %s1115
          %1117 = dma.done %s1113, 256
        $region40: #{tpu_custom_call.1} parent=35 // pred_fallthru
          _
      $region36: #{tpu_custom_call.1} parent=5 // pred_fallthru
        _
    $region6: #{tpu_custom_call.1} parent=1 // loop_footer
      %s15 = sadd.s32 1, %s11
    $region7: #{tpu_custom_call.1} parent=1 // loop_footer_branch
      %10 = sbr.rel target = $region3
    $region8: #{tpu_custom_call.1} parent=1 // loop_exit
      _
    %1118 = vsyncpa [#allocation3], 1
    %s1119 = scalar_lea.sflag [#allocation3], 1
    %1120 = vsyncpa %s1119, 1

</llo_original>
